<compile_context>
chip_gen: v5e
topology: v5e:2x2
jax: 0.10.0
libtpu: 0.0.40
codegen_flags: <defaults>
</compile_context>

<pallas_src>
import functools

import jax
import jax.numpy as jnp
from jax.experimental import pallas as pl
from jax.experimental.pallas import tpu as pltpu


def _round_up(x, m):
    return -(-x // m) * m


def _drl_kernel(xl_ref, xc_ref, xr_ref, m_ref, wd_ref, bd_ref, wi_ref, bi_ref,
                o_ref, *, dilation):
    """One (batch, time-tile) grid step.

    xl_ref : (1, Cs, Hs)    left halo (clamped block at t==0; zeroed in-kernel)
    xc_ref : (1, Cs, TT)    center time tile
    xr_ref : (1, Cs, Hs)    right halo (clamped block at t==last; zeroed here)
    m_ref  : (1, 1, TT)     first mask channel (f32)
    wd_ref : (3, Cout, Cs)  per-tap dilated-conv weights (taps read x[t-d],x[t],x[t+d])
    bd_ref : (Cout, 1)      dilated-conv bias (f32)
    wi_ref : (Cout, Cout)   1x1 conv weight
    bi_ref : (Cout, 1)      1x1 conv bias (f32)
    o_ref  : (1, Cout, TT)  output tile
    """
    d = dilation
    t = pl.program_id(1)
    last_t = pl.num_programs(1) - 1

    x_c = xc_ref[0]                                   # (Cs, TT) compute dtype
    Cs, TT = x_c.shape
    Hs = xl_ref.shape[2]
    Cout = o_ref.shape[1]

    # Conv zero-padding at the sequence boundaries: the halo blocks of the
    # first / last time tile are clamped duplicates -> zero them here.
    xlv = xl_ref[0]
    xrv = xr_ref[0]
    x_l = jnp.where(t == 0, jnp.zeros_like(xlv), xlv)          # (Cs, Hs)
    x_r = jnp.where(t == last_t, jnp.zeros_like(xrv), xrv)     # (Cs, Hs)

    # Time-shifted taps: static lane slices + one small (Cs, TT) concat each.
    x_prev = jnp.concatenate([x_l[:, Hs - d:], x_c[:, :TT - d]], axis=1)
    x_next = jnp.concatenate([x_c[:, d:], x_r[:, :d]], axis=1)

    # Dilated conv (kernel size 3): three accumulating MXU dots, f32 accumulation.
    h = jnp.dot(wd_ref[0], x_prev, preferred_element_type=jnp.float32)
    h = h + jnp.dot(wd_ref[1], x_c, preferred_element_type=jnp.float32)
    h = h + jnp.dot(wd_ref[2], x_next, preferred_element_type=jnp.float32)
    h = jnp.maximum(h + bd_ref[...], 0.0)                      # ReLU, (Cout, TT) f32

    # 1x1 conv == channel-mixing matmul.
    out = jnp.dot(wi_ref[...], h.astype(wi_ref.dtype),
                  preferred_element_type=jnp.float32) + bi_ref[...]

    # TODO(synk): nn.Dropout() is identity in eval mode; training-mode RNG
    # dropout is intentionally not applied here.

    # Residual + mask (mask broadcasts over channels); elementwise in f32.
    y = (x_c[:Cout, :].astype(jnp.float32) + out) * m_ref[0]
    o_ref[0] = y.astype(o_ref.dtype)


def dilated_residual_layer(x, mask, w_dilated, b_dilated, w_in, b_in, dilation,
                           *, tile_t=2048, compute_dtype=None, out_dtype=None):
    """x: (N, Cin, T), mask: (N, Cm, T).  Returns (N, Cout, T) in out_dtype."""
    N, Cin, T = x.shape
    Cout, Cin_w, K = w_dilated.shape
    assert K == 3 and Cin_w == Cin
    assert Cin == Cout, "residual add requires in_channel == out_channels"
    d = int(dilation)
    assert d >= 1
    f32 = jnp.float32
    cdt = x.dtype if compute_dtype is None else compute_dtype
    odt = x.dtype if out_dtype is None else out_dtype

    # Channels on sublanes (pad to 8), time on lanes (tiles of 128).
    Cs = _round_up(Cin, 8)
    Hs = _round_up(d, 128)                     # halo width: >= dilation, lane-aligned
    TT = _round_up(max(min(tile_t, _round_up(T, 128)), 128), 128)
    if d == Hs:                                # keep the in-kernel tap slices non-empty
        TT = max(TT, 2 * Hs)
    TT = _round_up(max(TT, Hs), Hs)            # halo blocks must tile the time tile
    Tp = _round_up(T, TT)
    nt = Tp // TT
    r = TT // Hs
    last_blk = Tp // Hs - 1

    # Only tail/channel padding (no TT-wide prologue, no transpose).  In a
    # stacked TCN keep T tile-aligned and C a multiple of 8 so this is a no-op.
    if Cs == Cin and Tp == T and cdt == x.dtype:
        x_p = x
    else:
        x_p = jnp.zeros((N, Cs, Tp), cdt).at[:, :Cin, :T].set(x.astype(cdt))

    if Tp == T:
        m_p = mask[:, 0:1, :].astype(f32)
    else:
        m_p = jnp.zeros((N, 1, Tp), f32).at[:, :, :T].set(
            mask[:, 0:1, :].astype(f32))

    # Per-tap weights (3, Cout, Cs); tap k reads x[t + (k-1)*dilation].
    wd = jnp.transpose(w_dilated, (2, 0, 1)).astype(f32)        # (3, Cout, Cin)
    if Cs != Cin:
        wd = jnp.zeros((3, Cout, Cs), f32).at[:, :, :Cin].set(wd)
    wd = wd.astype(cdt)
    wi = w_in[:, :, 0].astype(cdt)                              # (Cout, Cout)
    bd = b_dilated.astype(f32).reshape(Cout, 1)
    bi = b_in.astype(f32).reshape(Cout, 1)

    kernel = functools.partial(_drl_kernel, dilation=d)

    out_p = pl.pallas_call(
        kernel,
        out_shape=jax.ShapeDtypeStruct((N, Cout, Tp), odt),
        grid_spec=pltpu.PrefetchScalarGridSpec(
            num_scalar_prefetch=0,
            grid=(N, nt),
            in_specs=[
                # left halo / center / right halo views of the same x array.
                pl.BlockSpec((1, Cs, Hs),
                             lambda n, t: (n, 0, jnp.maximum(t * r - 1, 0))),
                pl.BlockSpec((1, Cs, TT), lambda n, t: (n, 0, t)),
                pl.BlockSpec((1, Cs, Hs),
                             lambda n, t: (n, 0, jnp.minimum((t + 1) * r, last_blk))),
                pl.BlockSpec((1, 1, TT), lambda n, t: (n, 0, t)),     # mask
                pl.BlockSpec((3, Cout, Cs), lambda n, t: (0, 0, 0)),  # wd (resident)
                pl.BlockSpec((Cout, 1), lambda n, t: (0, 0)),         # bd
                pl.BlockSpec((Cout, Cout), lambda n, t: (0, 0)),      # wi
                pl.BlockSpec((Cout, 1), lambda n, t: (0, 0)),         # bi
            ],
            out_specs=pl.BlockSpec((1, Cout, TT), lambda n, t: (n, 0, t)),
        ),
        compiler_params=pltpu.CompilerParams(
            dimension_semantics=("parallel", "parallel"),
            vmem_limit_bytes=32 * 1024 * 1024),
    )(x_p, x_p, x_p, m_p, wd, bd, wi, bi)

    # Drop padded time columns only when T was not tile-aligned (tiny for the
    # demo; in a stacked TCN keep T padded across layers so this never runs).
    return out_p if Tp == T else out_p[:, :, :T]


def reference_forward(x, mask, w_dilated, b_dilated, w_in, b_in, dilation):
    """Pure-JAX reference matching the PyTorch module (eval mode)."""
    h = jax.lax.conv_general_dilated(
        x, w_dilated,
        window_strides=(1,),
        padding=[(dilation, dilation)],
        rhs_dilation=(dilation,),
        dimension_numbers=("NCH", "OIH", "NCH"))
    h = jax.nn.relu(h + b_dilated[None, :, None])
    out = jnp.einsum("oc,nct->not", w_in[:, :, 0], h) + b_in[None, :, None]
    return (x + out) * mask[:, 0:1, :]


if __name__ == "__main__":
    key = jax.random.PRNGKey(0)
    k1, k2, k3, k4, k5, k6 = jax.random.split(key, 6)

    N, C, T = 2, 8, 16
    dilation = 2

    x = jax.random.normal(k1, (N, C, T), dtype=jnp.float32)
    mask = (jax.random.uniform(k2, (N, C, T)) > 0.3).astype(jnp.float32)

    w_dilated = 0.1 * jax.random.normal(k3, (C, C, 3), dtype=jnp.float32)
    b_dilated = 0.1 * jax.random.normal(k4, (C,), dtype=jnp.float32)
    w_in = 0.1 * jax.random.normal(k5, (C, C, 1), dtype=jnp.float32)
    b_in = 0.1 * jax.random.normal(k6, (C,), dtype=jnp.float32)

    y_ref = reference_forward(x, mask, w_dilated, b_dilated, w_in, b_in,
                              dilation)

    # Default path computes in x.dtype (f32): exact residual, tight check.
    y = dilated_residual_layer(x, mask, w_dilated, b_dilated, w_in, b_in,
                               dilation)
    y = jax.block_until_ready(y)
    assert y.shape == (N, C, T)
    assert jnp.allclose(y, y_ref, atol=2e-3, rtol=2e-3), "f32 path mismatch"

    # bf16 compute path (halves HBM traffic when the stack keeps bf16 activations).
    y16 = dilated_residual_layer(x, mask, w_dilated, b_dilated, w_in, b_in,
                                 dilation, compute_dtype=jnp.bfloat16)
    y16 = jax.block_until_ready(y16)
    assert y16.shape == (N, C, T)
    assert jnp.allclose(y16, y_ref, atol=5e-2, rtol=5e-2), "bf16 path mismatch"

    # Multi-tile case: exercises halo index maps across tile boundaries
    # (T=300 -> two 256-wide time tiles with 128-wide halos, dilation 8).
    T2, d2 = 300, 8
    x2 = jax.random.normal(k1, (N, C, T2), dtype=jnp.float32)
    mask2 = (jax.random.uniform(k2, (N, C, T2)) > 0.3).astype(jnp.float32)
    y2_ref = reference_forward(x2, mask2, w_dilated, b_dilated, w_in, b_in, d2)
    y2 = dilated_residual_layer(x2, mask2, w_dilated, b_dilated, w_in, b_in,
                                d2, tile_t=256)
    y2 = jax.block_until_ready(y2)
    assert y2.shape == (N, C, T2)
    assert jnp.allclose(y2, y2_ref, atol=2e-3, rtol=2e-3), "multi-tile mismatch"

    print("KERNEL_OK")
</pallas_src>

<mosaic_0001>
module attributes {stable_mosaic.version = 11 : i64} {
  func.func @_drl_kernel(%arg0: i32, %arg1: i32, %arg2: memref<1x8x128xf32, #tpu.memory_space<vmem>>, %arg3: memref<1x8x128xf32, #tpu.memory_space<vmem>>, %arg4: memref<1x8x128xf32, #tpu.memory_space<vmem>>, %arg5: memref<1x1x128xf32, #tpu.memory_space<vmem>>, %arg6: memref<3x8x8xf32, #tpu.memory_space<vmem>>, %arg7: memref<8x1xf32, #tpu.memory_space<vmem>>, %arg8: memref<8x8xf32, #tpu.memory_space<vmem>>, %arg9: memref<8x1xf32, #tpu.memory_space<vmem>>, %arg10: memref<1x8x128xf32, #tpu.memory_space<vmem>>) attributes {dimension_semantics = [#tpu.dimension_semantics<parallel>, #tpu.dimension_semantics<parallel>], iteration_bounds = array<i64: 2, 1>, scalar_prefetch = 0 : i64, scratch_operands = 0 : i64, tpu.core_type = #tpu.core_type<tc>, window_params = [{transform_indices = @transform_0, window_bounds = array<i64: 1, 8, 128>}, {transform_indices = @transform_1, window_bounds = array<i64: 1, 8, 128>}, {transform_indices = @transform_2, window_bounds = array<i64: 1, 8, 128>}, {transform_indices = @transform_3, window_bounds = array<i64: 1, 1, 128>}, {pipeline_mode = #tpu.pipeline_mode<synchronous>, transform_indices = @transform_4, window_bounds = array<i64: 3, 8, 8>}, {pipeline_mode = #tpu.pipeline_mode<synchronous>, transform_indices = @transform_5, window_bounds = array<i64: 8, 1>}, {pipeline_mode = #tpu.pipeline_mode<synchronous>, transform_indices = @transform_6, window_bounds = array<i64: 8, 8>}, {pipeline_mode = #tpu.pipeline_mode<synchronous>, transform_indices = @transform_7, window_bounds = array<i64: 8, 1>}, {transform_indices = @transform_8, window_bounds = array<i64: 1, 8, 128>}]} {
    %c0 = arith.constant 0 : index
    %c0_0 = arith.constant 0 : index
    %c0_1 = arith.constant 0 : index
    %0 = vector.load %arg3[%c0, %c0_0, %c0_1] : memref<1x8x128xf32, #tpu.memory_space<vmem>>, vector<1x8x128xf32>
    %1 = vector.shape_cast %0 : vector<1x8x128xf32> to vector<8x128xf32>
    %c0_2 = arith.constant 0 : index
    %c0_3 = arith.constant 0 : index
    %c0_4 = arith.constant 0 : index
    %2 = vector.load %arg2[%c0_2, %c0_3, %c0_4] : memref<1x8x128xf32, #tpu.memory_space<vmem>>, vector<1x8x128xf32>
    %3 = vector.shape_cast %2 : vector<1x8x128xf32> to vector<8x128xf32>
    %c0_5 = arith.constant 0 : index
    %c0_6 = arith.constant 0 : index
    %c0_7 = arith.constant 0 : index
    %4 = vector.load %arg4[%c0_5, %c0_6, %c0_7] : memref<1x8x128xf32, #tpu.memory_space<vmem>>, vector<1x8x128xf32>
    %5 = vector.shape_cast %4 : vector<1x8x128xf32> to vector<8x128xf32>
    %c0_i32 = arith.constant 0 : i32
    %6 = arith.cmpi eq, %arg1, %c0_i32 : i32
    %cst = arith.constant 0.000000e+00 : f32
    %7 = vector.broadcast %cst : f32 to vector<8x128xf32>
    %8 = arith.select %6, %7, %3 : vector<8x128xf32>
    %c0_i32_8 = arith.constant 0 : i32
    %9 = arith.cmpi eq, %arg1, %c0_i32_8 : i32
    %cst_9 = arith.constant 0.000000e+00 : f32
    %10 = vector.broadcast %cst_9 : f32 to vector<8x128xf32>
    %11 = arith.select %9, %10, %5 : vector<8x128xf32>
    %12 = vector.extract_strided_slice %8 {offsets = [0, 126], sizes = [8, 2], strides = [1, 1]} : vector<8x128xf32> to vector<8x2xf32>
    %13 = vector.extract_strided_slice %1 {offsets = [0, 0], sizes = [8, 126], strides = [1, 1]} : vector<8x128xf32> to vector<8x126xf32>
    %14 = tpu.concatenate %12, %13 in 1 : vector<8x2xf32>, vector<8x126xf32> -> vector<8x128xf32>
    %15 = vector.extract_strided_slice %1 {offsets = [0, 2], sizes = [8, 126], strides = [1, 1]} : vector<8x128xf32> to vector<8x126xf32>
    %16 = vector.extract_strided_slice %11 {offsets = [0, 0], sizes = [8, 2], strides = [1, 1]} : vector<8x128xf32> to vector<8x2xf32>
    %17 = tpu.concatenate %15, %16 in 1 : vector<8x126xf32>, vector<8x2xf32> -> vector<8x128xf32>
    %c0_10 = arith.constant 0 : index
    %c0_11 = arith.constant 0 : index
    %c0_12 = arith.constant 0 : index
    %18 = vector.load %arg6[%c0_10, %c0_11, %c0_12] : memref<3x8x8xf32, #tpu.memory_space<vmem>>, vector<1x8x8xf32>
    %19 = vector.shape_cast %18 : vector<1x8x8xf32> to vector<8x8xf32>
    %cst_13 = arith.constant dense<0.000000e+00> : vector<8x128xf32>
    %20 = tpu.matmul %19, %14, %cst_13 {dimension_numbers = #tpu.dot_dimension_numbers<[1], [0], [0], [1], [0, 0, 1, 1], [], []>} : vector<8x8xf32>, vector<8x128xf32>, vector<8x128xf32> -> vector<8x128xf32>
    %c1 = arith.constant 1 : index
    %c0_14 = arith.constant 0 : index
    %c0_15 = arith.constant 0 : index
    %21 = vector.load %arg6[%c1, %c0_14, %c0_15] : memref<3x8x8xf32, #tpu.memory_space<vmem>>, vector<1x8x8xf32>
    %22 = vector.shape_cast %21 : vector<1x8x8xf32> to vector<8x8xf32>
    %cst_16 = arith.constant dense<0.000000e+00> : vector<8x128xf32>
    %23 = tpu.matmul %22, %1, %cst_16 {dimension_numbers = #tpu.dot_dimension_numbers<[1], [0], [0], [1], [0, 0, 1, 1], [], []>} : vector<8x8xf32>, vector<8x128xf32>, vector<8x128xf32> -> vector<8x128xf32>
    %24 = arith.addf %20, %23 : vector<8x128xf32>
    %c2 = arith.constant 2 : index
    %c0_17 = arith.constant 0 : index
    %c0_18 = arith.constant 0 : index
    %25 = vector.load %arg6[%c2, %c0_17, %c0_18] : memref<3x8x8xf32, #tpu.memory_space<vmem>>, vector<1x8x8xf32>
    %26 = vector.shape_cast %25 : vector<1x8x8xf32> to vector<8x8xf32>
    %cst_19 = arith.constant dense<0.000000e+00> : vector<8x128xf32>
    %27 = tpu.matmul %26, %17, %cst_19 {dimension_numbers = #tpu.dot_dimension_numbers<[1], [0], [0], [1], [0, 0, 1, 1], [], []>} : vector<8x8xf32>, vector<8x128xf32>, vector<8x128xf32> -> vector<8x128xf32>
    %28 = arith.addf %24, %27 : vector<8x128xf32>
    %c0_20 = arith.constant 0 : index
    %c0_21 = arith.constant 0 : index
    %29 = vector.load %arg7[%c0_20, %c0_21] : memref<8x1xf32, #tpu.memory_space<vmem>>, vector<8x1xf32>
    %30 = vector.broadcast %29 : vector<8x1xf32> to vector<8x128xf32>
    %31 = arith.addf %28, %30 : vector<8x128xf32>
    %cst_22 = arith.constant 0.000000e+00 : f32
    %32 = vector.broadcast %cst_22 : f32 to vector<8x128xf32>
    %33 = arith.maximumf %31, %32 : vector<8x128xf32>
    %c0_23 = arith.constant 0 : index
    %c0_24 = arith.constant 0 : index
    %34 = vector.load %arg8[%c0_23, %c0_24] : memref<8x8xf32, #tpu.memory_space<vmem>>, vector<8x8xf32>
    %cst_25 = arith.constant dense<0.000000e+00> : vector<8x128xf32>
    %35 = tpu.matmul %34, %33, %cst_25 {dimension_numbers = #tpu.dot_dimension_numbers<[1], [0], [0], [1], [0, 0, 1, 1], [], []>} : vector<8x8xf32>, vector<8x128xf32>, vector<8x128xf32> -> vector<8x128xf32>
    %c0_26 = arith.constant 0 : index
    %c0_27 = arith.constant 0 : index
    %36 = vector.load %arg9[%c0_26, %c0_27] : memref<8x1xf32, #tpu.memory_space<vmem>>, vector<8x1xf32>
    %37 = vector.broadcast %36 : vector<8x1xf32> to vector<8x128xf32>
    %38 = arith.addf %35, %37 : vector<8x128xf32>
    %39 = arith.addf %1, %38 : vector<8x128xf32>
    %c0_28 = arith.constant 0 : index
    %c0_29 = arith.constant 0 : index
    %c0_30 = arith.constant 0 : index
    %40 = vector.load %arg5[%c0_28, %c0_29, %c0_30] : memref<1x1x128xf32, #tpu.memory_space<vmem>>, vector<1x1x128xf32>
    %41 = vector.shape_cast %40 : vector<1x1x128xf32> to vector<1x128xf32>
    %42 = vector.broadcast %41 : vector<1x128xf32> to vector<8x128xf32>
    %43 = arith.mulf %39, %42 : vector<8x128xf32>
    %c0_31 = arith.constant 0 : index
    %c0_32 = arith.constant 0 : index
    %c0_33 = arith.constant 0 : index
    %44 = vector.load %arg10[%c0_31, %c0_32, %c0_33] : memref<1x8x128xf32, #tpu.memory_space<vmem>>, vector<1x8x128xf32>
    %45 = vector.shape_cast %44 : vector<1x8x128xf32> to vector<8x128xf32>
    %46 = vector.shape_cast %43 : vector<8x128xf32> to vector<1x8x128xf32>
    tpu.vector_store %arg10[%c0_31, %c0_32, %c0_33], %46 {strides = array<i32>} : memref<1x8x128xf32, #tpu.memory_space<vmem>>, vector<1x8x128xf32>,
    return
  }
  func.func @transform_0(%arg0: i32, %arg1: i32) -> (i32, i32, i32) {
    %c1_i32 = arith.constant 1 : i32
    %0 = arith.muli %arg1, %c1_i32 : i32
    %c1_i32_0 = arith.constant 1 : i32
    %1 = arith.subi %0, %c1_i32_0 : i32
    %c0_i32 = arith.constant 0 : i32
    %2 = arith.maxsi %1, %c0_i32 : i32
    %c0_i32_1 = arith.constant 0 : i32
    %c0_i32_2 = arith.constant 0 : i32
    return %arg0, %c0_i32_1, %2 : i32, i32, i32
  }
  func.func @transform_1(%arg0: i32, %arg1: i32) -> (i32, i32, i32) {
    %c0_i32 = arith.constant 0 : i32
    %c0_i32_0 = arith.constant 0 : i32
    return %arg0, %c0_i32, %arg1 : i32, i32, i32
  }
  func.func @transform_2(%arg0: i32, %arg1: i32) -> (i32, i32, i32) {
    %c1_i32 = arith.constant 1 : i32
    %0 = arith.addi %arg1, %c1_i32 : i32
    %c1_i32_0 = arith.constant 1 : i32
    %1 = arith.muli %0, %c1_i32_0 : i32
    %c0_i32 = arith.constant 0 : i32
    %2 = arith.minsi %1, %c0_i32 : i32
    %c0_i32_1 = arith.constant 0 : i32
    %c0_i32_2 = arith.constant 0 : i32
    return %arg0, %c0_i32_1, %2 : i32, i32, i32
  }
  func.func @transform_3(%arg0: i32, %arg1: i32) -> (i32, i32, i32) {
    %c0_i32 = arith.constant 0 : i32
    %c0_i32_0 = arith.constant 0 : i32
    return %arg0, %c0_i32, %arg1 : i32, i32, i32
  }
  func.func @transform_4(%arg0: i32, %arg1: i32) -> (i32, i32, i32) {
    %c0_i32 = arith.constant 0 : i32
    %c0_i32_0 = arith.constant 0 : i32
    %c0_i32_1 = arith.constant 0 : i32
    %c0_i32_2 = arith.constant 0 : i32
    return %c0_i32, %c0_i32_0, %c0_i32_1 : i32, i32, i32
  }
  func.func @transform_5(%arg0: i32, %arg1: i32) -> (i32, i32) {
    %c0_i32 = arith.constant 0 : i32
    %c0_i32_0 = arith.constant 0 : i32
    %c0_i32_1 = arith.constant 0 : i32
    return %c0_i32, %c0_i32_0 : i32, i32
  }
  func.func @transform_6(%arg0: i32, %arg1: i32) -> (i32, i32) {
    %c0_i32 = arith.constant 0 : i32
    %c0_i32_0 = arith.constant 0 : i32
    %c0_i32_1 = arith.constant 0 : i32
    return %c0_i32, %c0_i32_0 : i32, i32
  }
  func.func @transform_7(%arg0: i32, %arg1: i32) -> (i32, i32) {
    %c0_i32 = arith.constant 0 : i32
    %c0_i32_0 = arith.constant 0 : i32
    %c0_i32_1 = arith.constant 0 : i32
    return %c0_i32, %c0_i32_0 : i32, i32
  }
  func.func @transform_8(%arg0: i32, %arg1: i32) -> (i32, i32, i32) {
    %c0_i32 = arith.constant 0 : i32
    %c0_i32_0 = arith.constant 0 : i32
    return %arg0, %c0_i32, %arg1 : i32, i32, i32
  }
}

</mosaic_0001>

<llo_original>
// kernel: tpu_custom_call.1
$region0: #{tpu_custom_call.1}
  #allocation0 [shape = 'u32[]', space=smem, size = 0x4, offset = 0x4, fixed_abs, tag = 'smem constant byte address 0x4 - core index']
  #allocation1 [shape = 'u32[72,128]{1,0:T(1,128)}', space=vmem, size = 0x9000, scoped, tag = 'internal scratch']
  %s0 = inlined_call_operand.vmem [shape: f32[2,8,128], index: 0, kind: input, shape index: {}]
  %s1 = inlined_call_operand.hbm [shape: f32[2,8,128], index: 1, kind: input, shape index: {}]
  %s2 = inlined_call_operand.hbm [shape: f32[2,8,128], index: 2, kind: input, shape index: {}]
  %s3 = inlined_call_operand.hbm [shape: f32[2,1,128], index: 3, kind: input, shape index: {}]
  %s4 = inlined_call_operand.hbm [shape: f32[3,8,8], index: 4, kind: input, shape index: {}]
  %s5 = inlined_call_operand.vmem [shape: f32[8,1], index: 5, kind: input, shape index: {}]
  %s6 = inlined_call_operand.hbm [shape: f32[8,8], index: 6, kind: input, shape index: {}]
  %s7 = inlined_call_operand.vmem [shape: f32[8,1], index: 7, kind: input, shape index: {}]
  %s8 = inlined_call_operand.hbm [shape: f32[2,8,128], index: 8, kind: output, shape index: {}]
  %s9 = sld [smem:[#allocation0]]
  $region85: #{tpu_custom_call.1} parent=0
    _
  %s11 = ssub.s32 1, %s9
  %s12 = scalar_select 0, %s11, %s9
  $region1: #{tpu_custom_call.1} parent=0
    #allocation2 [shape = 'u8[8192]{0}', space=vmem, size = 0x2000, scoped, tag = 'input window, operand 1']
    #allocation3 [shape = 's32[2]{0}', space=sflag, size = 0x8, scoped, tag = 'scoped memory for tpu_custom_call.1']
    #allocation4 [shape = 's32[2]{0}', space=sflag, size = 0x8, scoped, tag = 'scoped memory for tpu_custom_call.1']
    #allocation5 [shape = 'u8[8192]{0}', space=vmem, size = 0x2000, scoped, tag = 'input window, operand 2']
    #allocation6 [shape = 's32[2]{0}', space=sflag, size = 0x8, scoped, tag = 'scoped memory for tpu_custom_call.1']
    #allocation7 [shape = 'u8[1024]{0}', space=vmem, size = 0x400, scoped, tag = 'input window, operand 3']
    #allocation8 [shape = 'u8[12288]{0}', space=vmem, size = 0x3000, scoped, tag = 'input window, operand 4, single buffered']
    #allocation9 [shape = 's32[1]{0}', space=sflag, size = 0x4, scoped, tag = 'scoped memory for tpu_custom_call.1']
    #allocation10 [shape = 'u8[4096]{0}', space=vmem, size = 0x1000, scoped, tag = 'input window, operand 6, single buffered']
    #allocation11 [shape = 'u8[8192]{0}', space=vmem, size = 0x2000, scoped, tag = 'output window, operand 0']
    %13 = vsyncpa [#allocation3], 0
    %s14 = scalar_lea.sflag [#allocation3], 1
    %15 = vsyncpa %s14, 0
    %16 = vsyncpa [#allocation6], 0
    %s17 = scalar_lea.sflag [#allocation6], 1
    %18 = vsyncpa %s17, 0
    %19 = vsyncpa [#allocation9], 0
    %20 = vsyncpa [#allocation4], 0
    %s21 = scalar_lea.sflag [#allocation4], 1
    %22 = vsyncpa %s21, 0
    loop: start=0, step=1, limit=4
    $region2: #{tpu_custom_call.1} parent=1 // loop_pre_header
      _
    $region3: #{tpu_custom_call.1} parent=1 // loop_header
      %s24 = sphi 0, %s28
      %p25 = scmp.ge.s32.totalorder %s24, 4
      %s31 = sphi 0, %s43
      %s32 = sphi 0, %s39
      %s33 = sphi 0, %s31
      %s34 = sphi 0, %s32
      %s35 = sphi 0, %s33
      %s36 = sphi 0, %s34
      %s54 = sphi 0, %s56
      %s57 = sphi 0, %s54
      %s58 = sphi 0, %s57
      %s74 = sphi 0, %s58
      %s82 = sphi 0, %s84
      %s85 = sphi 0, %s82
      %s86 = sphi 0, %s85
      %s102 = sphi 0, %s86
      %s116 = sphi 0, %s118
      %s119 = sphi 0, %s116
      %s120 = sphi 0, %s119
      %s136 = sphi 0, %s120
      %s144 = sphi 0, %s146
      %s147 = sphi 0, %s144
      %s148 = sphi 0, %s147
      %s164 = sphi 0, %s148
      %s168 = sphi 0, %s168
      %s170 = sphi 0, %s168
      %s171 = sphi 0, %s170
      %s185 = sphi 0, %s171
      %s189 = sphi 0, %s189
      %s191 = sphi 0, %s189
      %s192 = sphi 0, %s191
      %s206 = sphi 0, %s192
      %s210 = sphi 0, %s210
      %s212 = sphi 0, %s210
      %s213 = sphi 0, %s212
      %s227 = sphi 0, %s213
      %s231 = sphi 0, %s231
      %s233 = sphi 0, %s231
      %s234 = sphi 0, %s233
      %s248 = sphi 0, %s234
      %s256 = sphi 0, %s258
      %s259 = sphi 0, %s256
      %s260 = sphi 0, %s259
      %s276 = sphi 0, %s260
    $region4: #{tpu_custom_call.1} parent=1 // loop_header_branch
      %27 = sbr.rel (%p25) target = $region8
    $region5: #{tpu_custom_call.1} parent=1 // loop_body
      %s29 = ssub.s32 %s24, 1
      %s30 = ssub.s32 %s24, 2
      %s37 = sadd.s32 1, %s32
      %p38 = scmp.ge.s32.totalorder %s37, 1
      %s39 = scalar_select %p38, 0, %s37
      %s40 = sadd.s32 1, %s31
      %s41 = scalar_select %p38, %s40, %s31
      %p42 = scmp.ge.s32.totalorder %s41, 2
      %s43 = scalar_select %p42, 0, %s41
      %s44 = ssub.s32 %s32, 1
      %p45 = scmp.gt.s32.totalorder %s44, 0
      %s46 = scalar_select %p45, %s44, 0
      %s47 = ssub.s32 %s39, 1
      %p48 = scmp.gt.s32.totalorder %s47, 0
      %s49 = scalar_select %p48, %s47, 0
      %s50 = ssub.s32 %s31, %s43
      %s51 = ssub.s32 %s46, %s49
      %s52 = sor.u32 %s50, %s51
      %p53 = scmp.eq.s32.totalorder %s52, 0
      %s55 = sadd.s32 %s54, 1
      %s56 = scalar_select %p53, %s54, %s55
      %p59 = pneg %p53
      %p60 = scmp.eq.s32.totalorder %s24, 1
      %p61 = por %p59, %p60
      %p62 = scmp.ne.s32.totalorder %s54, %s57
      %p63 = scmp.eq.s32.totalorder %s24, 0
      %p64 = por %p62, %p63
      %p65 = scmp.ne.s32.totalorder %s54, %s57
      %p66 = scmp.eq.s32.totalorder %s29, 1
      %p67 = por %p65, %p66
      %p68 = scmp.ne.s32.totalorder %s57, %s58
      %p69 = scmp.eq.s32.totalorder %s29, 0
      %p70 = por %p68, %p69
      %p71 = scmp.ne.s32.totalorder %s57, %s58
      %p72 = scmp.eq.s32.totalorder %s30, 1
      %p73 = por %p71, %p72
      %p75 = scmp.ne.s32.totalorder %s58, %s74
      %p76 = scmp.eq.s32.totalorder %s30, 0
      %p77 = por %p75, %p76
      %s78 = ssub.s32 %s31, %s43
      %s79 = ssub.s32 %s32, %s39
      %s80 = sor.u32 %s78, %s79
      %p81 = scmp.eq.s32.totalorder %s80, 0
      %s83 = sadd.s32 %s82, 1
      %s84 = scalar_select %p81, %s82, %s83
      %p87 = pneg %p81
      %p88 = scmp.eq.s32.totalorder %s24, 1
      %p89 = por %p87, %p88
      %p90 = scmp.ne.s32.totalorder %s82, %s85
      %p91 = scmp.eq.s32.totalorder %s24, 0
      %p92 = por %p90, %p91
      %p93 = scmp.ne.s32.totalorder %s82, %s85
      %p94 = scmp.eq.s32.totalorder %s29, 1
      %p95 = por %p93, %p94
      %p96 = scmp.ne.s32.totalorder %s85, %s86
      %p97 = scmp.eq.s32.totalorder %s29, 0
      %p98 = por %p96, %p97
      %p99 = scmp.ne.s32.totalorder %s85, %s86
      %p100 = scmp.eq.s32.totalorder %s30, 1
      %p101 = por %p99, %p100
      %p103 = scmp.ne.s32.totalorder %s86, %s102
      %p104 = scmp.eq.s32.totalorder %s30, 0
      %p105 = por %p103, %p104
      %s106 = sadd.s32 %s32, 1
      %p107 = scmp.lt.s32.totalorder %s106, 0
      %s108 = scalar_select %p107, %s106, 0
      %s109 = sadd.s32 %s39, 1
      %p110 = scmp.lt.s32.totalorder %s109, 0
      %s111 = scalar_select %p110, %s109, 0
      %s112 = ssub.s32 %s31, %s43
      %s113 = ssub.s32 %s108, %s111
      %s114 = sor.u32 %s112, %s113
      %p115 = scmp.eq.s32.totalorder %s114, 0
      %s117 = sadd.s32 %s116, 1
      %s118 = scalar_select %p115, %s116, %s117
      %p121 = pneg %p115
      %p122 = scmp.eq.s32.totalorder %s24, 1
      %p123 = por %p121, %p122
      %p124 = scmp.ne.s32.totalorder %s116, %s119
      %p125 = scmp.eq.s32.totalorder %s24, 0
      %p126 = por %p124, %p125
      %p127 = scmp.ne.s32.totalorder %s116, %s119
      %p128 = scmp.eq.s32.totalorder %s29, 1
      %p129 = por %p127, %p128
      %p130 = scmp.ne.s32.totalorder %s119, %s120
      %p131 = scmp.eq.s32.totalorder %s29, 0
      %p132 = por %p130, %p131
      %p133 = scmp.ne.s32.totalorder %s119, %s120
      %p134 = scmp.eq.s32.totalorder %s30, 1
      %p135 = por %p133, %p134
      %p137 = scmp.ne.s32.totalorder %s120, %s136
      %p138 = scmp.eq.s32.totalorder %s30, 0
      %p139 = por %p137, %p138
      %s140 = ssub.s32 %s31, %s43
      %s141 = ssub.s32 %s32, %s39
      %s142 = sor.u32 %s140, %s141
      %p143 = scmp.eq.s32.totalorder %s142, 0
      %s145 = sadd.s32 %s144, 1
      %s146 = scalar_select %p143, %s144, %s145
      %p149 = pneg %p143
      %p150 = scmp.eq.s32.totalorder %s24, 1
      %p151 = por %p149, %p150
      %p152 = scmp.ne.s32.totalorder %s144, %s147
      %p153 = scmp.eq.s32.totalorder %s24, 0
      %p154 = por %p152, %p153
      %p155 = scmp.ne.s32.totalorder %s144, %s147
      %p156 = scmp.eq.s32.totalorder %s29, 1
      %p157 = por %p155, %p156
      %p158 = scmp.ne.s32.totalorder %s147, %s148
      %p159 = scmp.eq.s32.totalorder %s29, 0
      %p160 = por %p158, %p159
      %p161 = scmp.ne.s32.totalorder %s147, %s148
      %p162 = scmp.eq.s32.totalorder %s30, 1
      %p163 = por %p161, %p162
      %p165 = scmp.ne.s32.totalorder %s148, %s164
      %p166 = scmp.eq.s32.totalorder %s30, 0
      %p167 = por %p165, %p166
      %s169 = sadd.s32 %s168, 1
      %p172 = scmp.eq.s32.totalorder %s24, 1
      %p173 = scmp.ne.s32.totalorder %s168, %s170
      %p174 = scmp.eq.s32.totalorder %s24, 0
      %p175 = por %p173, %p174
      %p176 = scmp.ne.s32.totalorder %s168, %s170
      %p177 = scmp.eq.s32.totalorder %s29, 1
      %p178 = por %p176, %p177
      %p179 = scmp.ne.s32.totalorder %s170, %s171
      %p180 = scmp.eq.s32.totalorder %s29, 0
      %p181 = por %p179, %p180
      %p182 = scmp.ne.s32.totalorder %s170, %s171
      %p183 = scmp.eq.s32.totalorder %s30, 1
      %p184 = por %p182, %p183
      %p186 = scmp.ne.s32.totalorder %s171, %s185
      %p187 = scmp.eq.s32.totalorder %s30, 0
      %p188 = por %p186, %p187
      %s190 = sadd.s32 %s189, 1
      %p193 = scmp.eq.s32.totalorder %s24, 1
      %p194 = scmp.ne.s32.totalorder %s189, %s191
      %p195 = scmp.eq.s32.totalorder %s24, 0
      %p196 = por %p194, %p195
      %p197 = scmp.ne.s32.totalorder %s189, %s191
      %p198 = scmp.eq.s32.totalorder %s29, 1
      %p199 = por %p197, %p198
      %p200 = scmp.ne.s32.totalorder %s191, %s192
      %p201 = scmp.eq.s32.totalorder %s29, 0
      %p202 = por %p200, %p201
      %p203 = scmp.ne.s32.totalorder %s191, %s192
      %p204 = scmp.eq.s32.totalorder %s30, 1
      %p205 = por %p203, %p204
      %p207 = scmp.ne.s32.totalorder %s192, %s206
      %p208 = scmp.eq.s32.totalorder %s30, 0
      %p209 = por %p207, %p208
      %s211 = sadd.s32 %s210, 1
      %p214 = scmp.eq.s32.totalorder %s24, 1
      %p215 = scmp.ne.s32.totalorder %s210, %s212
      %p216 = scmp.eq.s32.totalorder %s24, 0
      %p217 = por %p215, %p216
      %p218 = scmp.ne.s32.totalorder %s210, %s212
      %p219 = scmp.eq.s32.totalorder %s29, 1
      %p220 = por %p218, %p219
      %p221 = scmp.ne.s32.totalorder %s212, %s213
      %p222 = scmp.eq.s32.totalorder %s29, 0
      %p223 = por %p221, %p222
      %p224 = scmp.ne.s32.totalorder %s212, %s213
      %p225 = scmp.eq.s32.totalorder %s30, 1
      %p226 = por %p224, %p225
      %p228 = scmp.ne.s32.totalorder %s213, %s227
      %p229 = scmp.eq.s32.totalorder %s30, 0
      %p230 = por %p228, %p229
      %s232 = sadd.s32 %s231, 1
      %p235 = scmp.eq.s32.totalorder %s24, 1
      %p236 = scmp.ne.s32.totalorder %s231, %s233
      %p237 = scmp.eq.s32.totalorder %s24, 0
      %p238 = por %p236, %p237
      %p239 = scmp.ne.s32.totalorder %s231, %s233
      %p240 = scmp.eq.s32.totalorder %s29, 1
      %p241 = por %p239, %p240
      %p242 = scmp.ne.s32.totalorder %s233, %s234
      %p243 = scmp.eq.s32.totalorder %s29, 0
      %p244 = por %p242, %p243
      %p245 = scmp.ne.s32.totalorder %s233, %s234
      %p246 = scmp.eq.s32.totalorder %s30, 1
      %p247 = por %p245, %p246
      %p249 = scmp.ne.s32.totalorder %s234, %s248
      %p250 = scmp.eq.s32.totalorder %s30, 0
      %p251 = por %p249, %p250
      %s252 = ssub.s32 %s31, %s43
      %s253 = ssub.s32 %s32, %s39
      %s254 = sor.u32 %s252, %s253
      %p255 = scmp.eq.s32.totalorder %s254, 0
      %s257 = sadd.s32 %s256, 1
      %s258 = scalar_select %p255, %s256, %s257
      %p261 = pneg %p255
      %p262 = scmp.eq.s32.totalorder %s24, 1
      %p263 = por %p261, %p262
      %p264 = scmp.ne.s32.totalorder %s256, %s259
      %p265 = scmp.eq.s32.totalorder %s24, 0
      %p266 = por %p264, %p265
      %p267 = scmp.ne.s32.totalorder %s256, %s259
      %p268 = scmp.eq.s32.totalorder %s29, 1
      %p269 = por %p267, %p268
      %p270 = scmp.ne.s32.totalorder %s259, %s260
      %p271 = scmp.eq.s32.totalorder %s29, 0
      %p272 = por %p270, %p271
      %p273 = scmp.ne.s32.totalorder %s259, %s260
      %p274 = scmp.eq.s32.totalorder %s30, 1
      %p275 = por %p273, %p274
      %p277 = scmp.ne.s32.totalorder %s260, %s276
      %p278 = scmp.eq.s32.totalorder %s30, 0
      %p279 = por %p277, %p278
      %p280 = scmp.le.s32.totalorder 1, %s24
      %p281 = scmp.lt.s32.totalorder %s24, 3
      %p282 = pnand %p280, %p281
      %p283 = pneg %p282
      // Predicated region
      $region9: #{tpu_custom_call.1} parent=5 // pred_check
        _
      $region10: #{tpu_custom_call.1} parent=5 // pred_check_branch
        %285 = sbr.rel (%p282) target = $region12
      $region11: #{tpu_custom_call.1} parent=5 // pred_region
        %s286 = ssub.s32 %s24, 1
        // Predicated region
        $region13: #{tpu_custom_call.1} parent=11 // pred_check
          %p287 = pneg %p181
        $region14: #{tpu_custom_call.1} parent=11 // pred_check_branch
          %289 = sbr.rel (%p287) target = $region16
        $region15: #{tpu_custom_call.1} parent=11 // pred_region
          %291 = vsyncadd [#allocation9], 0
          %s292 = sshll.u32 %s4, 4
          %s293 = int_to_ptr.hbm [resolvable:$true] %s292
          %s294 = sshll.u32 [#allocation8], 4
          %s295 = int_to_ptr.vmem [resolvable:$true] %s294
          %300 = dma.hbm_to_vmem [thread:$0]  %s293, 384, %s295, [#allocation9], 128, 128, 8
        $region16: #{tpu_custom_call.1} parent=11 // pred_fallthru
          _
        // Predicated region
        $region17: #{tpu_custom_call.1} parent=11 // pred_check
          %p301 = pneg %p202
        $region18: #{tpu_custom_call.1} parent=11 // pred_check_branch
          %303 = sbr.rel (%p301) target = $region20
        $region19: #{tpu_custom_call.1} parent=11 // pred_region
          _
        $region20: #{tpu_custom_call.1} parent=11 // pred_fallthru
          _
        // Predicated region
        $region21: #{tpu_custom_call.1} parent=11 // pred_check
          %p304 = pneg %p223
        $region22: #{tpu_custom_call.1} parent=11 // pred_check_branch
          %306 = sbr.rel (%p304) target = $region24
        $region23: #{tpu_custom_call.1} parent=11 // pred_region
          %308 = vsyncadd [#allocation9], 0
          %s310 = sshll.u32 %s6, 4
          %s311 = int_to_ptr.hbm [resolvable:$true] %s310
          %s312 = sshll.u32 [#allocation10], 4
          %s313 = int_to_ptr.vmem [resolvable:$true] %s312
          %315 = dma.hbm_to_vmem [thread:$0]  %s311, 128, %s313, [#allocation9]
        $region24: #{tpu_custom_call.1} parent=11 // pred_fallthru
          _
        // Predicated region
        $region25: #{tpu_custom_call.1} parent=11 // pred_check
          %p316 = pneg %p244
        $region26: #{tpu_custom_call.1} parent=11 // pred_check_branch
          %318 = sbr.rel (%p316) target = $region28
        $region27: #{tpu_custom_call.1} parent=11 // pred_region
          _
        $region28: #{tpu_custom_call.1} parent=11 // pred_fallthru
          _
      $region12: #{tpu_custom_call.1} parent=5 // pred_fallthru
        _
      %p319 = scmp.lt.s32.totalorder %s24, 2
      // Predicated region
      $region29: #{tpu_custom_call.1} parent=5 // pred_check
        %p320 = pneg %p319
      $region30: #{tpu_custom_call.1} parent=5 // pred_check_branch
        %322 = sbr.rel (%p320) target = $region32
      $region31: #{tpu_custom_call.1} parent=5 // pred_region
        // Predicated region
        $region33: #{tpu_custom_call.1} parent=31 // pred_check
          %p323 = pneg %p64
        $region34: #{tpu_custom_call.1} parent=31 // pred_check_branch
          %325 = sbr.rel (%p323) target = $region36
        $region35: #{tpu_custom_call.1} parent=31 // pred_region
          %s326 = ssub.s32 %s32, 1
          %p327 = scmp.gt.s32.totalorder %s326, 0
          %s328 = scalar_select %p327, %s326, 0
          %p329 = scmp.lt.s32.totalorder %s31, 1
          %s330 = scalar_select %p329, %s31, 1
          %p331 = scmp.lt.s32.totalorder %s328, 0
          %s332 = scalar_select %p331, %s328, 0
          %s333 = sadd.s32 %s332, %s330
          %s334 = smul.addr %s333, 8
          %s335 = scalar_lea.vmem %s0, %s334
          %s336 = ssub.s32 %s32, 1
          %p337 = scmp.gt.s32.totalorder %s336, 0
          %s338 = scalar_select %p337, %s336, 0
        $region36: #{tpu_custom_call.1} parent=31 // pred_fallthru
          _
        // Predicated region
        $region37: #{tpu_custom_call.1} parent=31 // pred_check
          %p339 = pneg %p92
        $region38: #{tpu_custom_call.1} parent=31 // pred_check_branch
          %341 = sbr.rel (%p339) target = $region40
        $region39: #{tpu_custom_call.1} parent=31 // pred_region
          %s342 = sand.u32 %s82, 1
          %s343 = scalar_lea.sflag [#allocation3], %s342
          %s344 = sand.u32 %s82, 1
          %s345 = smul.addr %s344, 8
          %s346 = scalar_lea.vmem [#allocation2], %s345
          %348 = vsyncadd %s343, 0
          %s349 = sadd.s32 %s32, %s31
          %s350 = smul.addr %s349, 8
          %s351 = scalar_lea.hbm %s1, %s350
          %s353 = sshll.u32 %s351, 4
          %s354 = int_to_ptr.hbm [resolvable:$true] %s353
          %s355 = sshll.u32 %s346, 4
          %s356 = int_to_ptr.vmem [resolvable:$true] %s355
          %358 = dma.hbm_to_vmem [thread:$0]  %s354, 128, %s356, %s343
        $region40: #{tpu_custom_call.1} parent=31 // pred_fallthru
          _
        // Predicated region
        $region41: #{tpu_custom_call.1} parent=31 // pred_check
          %p359 = pneg %p126
        $region42: #{tpu_custom_call.1} parent=31 // pred_check_branch
          %361 = sbr.rel (%p359) target = $region44
        $region43: #{tpu_custom_call.1} parent=31 // pred_region
          %s362 = sand.u32 %s24, 1
          %s363 = scalar_lea.sflag [#allocation6], %s362
          %s364 = sand.u32 %s116, 1
          %s365 = smul.addr %s364, 8
          %s366 = scalar_lea.vmem [#allocation5], %s365
          %s367 = sadd.s32 %s32, 1
          %p368 = scmp.lt.s32.totalorder %s367, 0
          %s369 = scalar_select %p368, %s367, 0
          %371 = vsyncadd %s363, 0
          %s372 = sadd.s32 %s369, %s31
          %s373 = smul.addr %s372, 8
          %s374 = scalar_lea.hbm %s2, %s373
          %s376 = sshll.u32 %s374, 4
          %s377 = int_to_ptr.hbm [resolvable:$true] %s376
          %s378 = sshll.u32 %s366, 4
          %s379 = int_to_ptr.vmem [resolvable:$true] %s378
          %381 = dma.hbm_to_vmem [thread:$0]  %s377, 128, %s379, %s363
        $region44: #{tpu_custom_call.1} parent=31 // pred_fallthru
          _
        // Predicated region
        $region45: #{tpu_custom_call.1} parent=31 // pred_check
          %p382 = pneg %p154
        $region46: #{tpu_custom_call.1} parent=31 // pred_check_branch
          %384 = sbr.rel (%p382) target = $region48
        $region47: #{tpu_custom_call.1} parent=31 // pred_region
          %s385 = sand.u32 %s24, 1
          %s386 = scalar_lea.sflag [#allocation6], %s385
          %s387 = sand.u32 %s144, 1
          %s388 = scalar_lea.vmem [#allocation7], %s387
          %390 = vsyncadd %s386, 0
          %s391 = sadd.s32 %s32, %s31
          %s392 = scalar_lea.hbm %s3, %s391
          %s394 = sshll.u32 %s392, 4
          %s395 = int_to_ptr.hbm [resolvable:$true] %s394
          %s396 = sshll.u32 %s388, 4
          %s397 = int_to_ptr.vmem [resolvable:$true] %s396
          %399 = dma.hbm_to_vmem [thread:$0]  %s395, 16, %s397, %s386
        $region48: #{tpu_custom_call.1} parent=31 // pred_fallthru
          _
      $region32: #{tpu_custom_call.1} parent=5 // pred_fallthru
        _
      %p400 = scmp.le.s32.totalorder 1, %s24
      %p401 = scmp.lt.s32.totalorder %s24, 3
      %p402 = pnand %p400, %p401
      %p403 = pneg %p402
      // Predicated region
      $region49: #{tpu_custom_call.1} parent=5 // pred_check
        _
      $region50: #{tpu_custom_call.1} parent=5 // pred_check_branch
        %405 = sbr.rel (%p402) target = $region52
      $region51: #{tpu_custom_call.1} parent=5 // pred_region
        %s406 = ssub.s32 %s24, 1
        %s407 = sand.u32 %s85, 1
        %s408 = scalar_lea.sflag [#allocation3], %s407
        %s409 = sand.u32 %s85, 1
        %s410 = smul.addr %s409, 8
        %s411 = scalar_lea.vmem [#allocation2], %s410
        // Predicated region
        $region53: #{tpu_custom_call.1} parent=51 // pred_check
          %p412 = pneg %p98
        $region54: #{tpu_custom_call.1} parent=51 // pred_check_branch
          %414 = sbr.rel (%p412) target = $region56
        $region55: #{tpu_custom_call.1} parent=51 // pred_region
          %416 = dma.done %s408, 128
        $region56: #{tpu_custom_call.1} parent=51 // pred_fallthru
          _
        %s417 = sand.u32 %s29, 1
        %s418 = scalar_lea.sflag [#allocation6], %s417
        %s419 = sand.u32 %s119, 1
        %s420 = smul.addr %s419, 8
        %s421 = scalar_lea.vmem [#allocation5], %s420
        // Predicated region
        $region57: #{tpu_custom_call.1} parent=51 // pred_check
          %p422 = pneg %p132
        $region58: #{tpu_custom_call.1} parent=51 // pred_check_branch
          %424 = sbr.rel (%p422) target = $region60
        $region59: #{tpu_custom_call.1} parent=51 // pred_region
          %426 = dma.done %s418, 128
        $region60: #{tpu_custom_call.1} parent=51 // pred_fallthru
          _
        %s427 = sand.u32 %s29, 1
        %s428 = scalar_lea.sflag [#allocation6], %s427
        %s429 = sand.u32 %s147, 1
        %s430 = scalar_lea.vmem [#allocation7], %s429
        // Predicated region
        $region61: #{tpu_custom_call.1} parent=51 // pred_check
          %p431 = pneg %p160
        $region62: #{tpu_custom_call.1} parent=51 // pred_check_branch
          %433 = sbr.rel (%p431) target = $region64
        $region63: #{tpu_custom_call.1} parent=51 // pred_region
          %435 = dma.done %s428, 16
        $region64: #{tpu_custom_call.1} parent=51 // pred_fallthru
          _
        // Predicated region
        $region65: #{tpu_custom_call.1} parent=51 // pred_check
          %p436 = pneg %p181
        $region66: #{tpu_custom_call.1} parent=51 // pred_check_branch
          %438 = sbr.rel (%p436) target = $region68
        $region67: #{tpu_custom_call.1} parent=51 // pred_region
          %440 = dma.done [#allocation9], 384
        $region68: #{tpu_custom_call.1} parent=51 // pred_fallthru
          _
        // Predicated region
        $region69: #{tpu_custom_call.1} parent=51 // pred_check
          %p441 = pneg %p223
        $region70: #{tpu_custom_call.1} parent=51 // pred_check_branch
          %443 = sbr.rel (%p441) target = $region72
        $region71: #{tpu_custom_call.1} parent=51 // pred_region
          %445 = dma.done [#allocation9], 128
        $region72: #{tpu_custom_call.1} parent=51 // pred_fallthru
          _
        %s446 = ssub.s32 %s34, 1
        %p447 = scmp.gt.s32.totalorder %s446, 0
        %s448 = scalar_select %p447, %s446, 0
        %p449 = scmp.lt.s32.totalorder %s33, 1
        %s450 = scalar_select %p449, %s33, 1
        %p451 = scmp.lt.s32.totalorder %s448, 0
        %s452 = scalar_select %p451, %s448, 0
        %s453 = sadd.s32 %s452, %s450
        %s454 = smul.addr %s453, 8
        %s455 = scalar_lea.vmem %s0, %s454
        %p456 = pneg %p70
        %p457 = pneg %p67
        %s458 = sand.u32 %s85, 1
        %s459 = scalar_lea.sflag [#allocation3], %s458
        %s460 = sand.u32 %s85, 1
        %s461 = smul.addr %s460, 8
        %s462 = scalar_lea.vmem [#allocation2], %s461
        %p463 = pneg %p98
        %p464 = pneg %p95
        %s465 = sand.u32 %s29, 1
        %s466 = scalar_lea.sflag [#allocation6], %s465
        %s467 = sand.u32 %s119, 1
        %s468 = smul.addr %s467, 8
        %s469 = scalar_lea.vmem [#allocation5], %s468
        %p470 = pneg %p132
        %p471 = pneg %p129
        %s472 = sand.u32 %s29, 1
        %s473 = scalar_lea.sflag [#allocation6], %s472
        %s474 = sand.u32 %s147, 1
        %s475 = scalar_lea.vmem [#allocation7], %s474
        %p476 = pneg %p160
        %p477 = pneg %p157
        %p478 = pneg %p181
        %p479 = pneg %p178
        %p480 = pneg %p202
        %p481 = pneg %p199
        %p482 = pneg %p223
        %p483 = pneg %p220
        %p484 = pneg %p244
        %p485 = pneg %p241
        %p486 = pneg %p272
        %p487 = pneg %p269
        %s488 = sand.u32 %s259, 1
        %s489 = scalar_lea.sflag [#allocation4], %s488
        %s490 = sand.u32 %s259, 1
        %s491 = smul.addr %s490, 8
        %s492 = scalar_lea.vmem [#allocation11], %s491
        %s493 = ssub.s32 %s34, 1
        %p494 = scmp.gt.s32.totalorder %s493, 0
        %s495 = scalar_select %p494, %s493, 0
        %p496 = scmp.lt.s32.totalorder %s33, 1
        %s497 = scalar_select %p496, %s33, 1
        %p498 = scmp.lt.s32.totalorder %s495, 0
        %s499 = scalar_select %p498, %s495, 0
        %s500 = sadd.s32 %s499, %s497
        %s501 = smul.addr %s500, 8
        %s502 = scalar_lea.vmem %s0, %s501
        %s503 = ssub.s32 %s34, 1
        %p504 = scmp.gt.s32.totalorder %s503, 0
        %s505 = scalar_select %p504, %s503, 0
        %s506 = sadd.s32 %s34, 1
        %p507 = scmp.lt.s32.totalorder %s506, 0
        %s508 = scalar_select %p507, %s506, 0
        %v509 = vld [vmem:[%s411] sm:$0xff]
        %v510 = vld [vmem:[%s502] sm:$0xff]
        %v511 = vld [vmem:[%s421] sm:$0xff]
        %p512 = scmp.eq.s32.totalorder %s34, 0
        %s513 = scalar_select %p512, 1, 0
        %v514 = vstv %s513
        %vm515 = vcmp.eq.s32.totalorder %v514, 1
        %v516 = vsel %vm515, 0.0, %v510
        %v517 = vsel %vm515, 0.0, %v511
        %519 = vrot.lane.b32.xlu0 %v516, 2
        %v520 = vpop.permute.xlu0 %519
        %523 = vrot.lane.b32.xlu0 %v509, 2
        %v524 = vpop.permute.xlu0 %523
        %vm526 = vcmask 15360
        %v527 = vsel %vm526, %v520, %v524
        %528 = vrot.lane.b32.xlu0 %v509, 126
        %v529 = vpop.permute.xlu0 %528
        %532 = vrot.lane.b32.xlu0 %v517, 126
        %v533 = vpop.permute.xlu0 %532
        %vm535 = vcmask 1031168
        %v536 = vsel %vm535, %v529, %v533
        %v537 = vld [vmem:[#allocation8] sm:$0xff]
        %s538 = scalar_lea.vmem [#allocation8], 8
        %v539 = vld [vmem:[%s538] sm:$0xff]
        %vm540 = vcmask 64512
        %v542 = vsel %vm540, %v539, 0
        %544 = vmatpush.msra.mxu0 0.0
        %545 = vmatpush.msra.mxu0 0.0
        %546 = vmatpush.msra.mxu0 0.0
        %547 = vmatpush.msra.mxu0 0.0
        %548 = vmatpush.msra.mxu0 0.0
        %549 = vmatpush.msra.mxu0 0.0
        %550 = vmatpush.msra.mxu0 0.0
        %551 = vmatpush.msra.mxu0 0.0
        %552 = vmatpush.msra.mxu0 0.0
        %553 = vmatpush.msra.mxu0 0.0
        %554 = vmatpush.msra.mxu0 0.0
        %555 = vmatpush.msra.mxu0 0.0
        %556 = vmatpush.msra.mxu0 0.0
        %557 = vmatpush.msra.mxu0 0.0
        %558 = vmatpush.msra.mxu0 0.0
        %559 = vmatpush.msra.mxu0 %v509
        %560 = vmatmul.f32.gmra.mxu0 %v542
        %v561 = vpop.f32.mrf.mxu0
        %v562 = vadd.f32 0.0, %v561
        %563 = vdwg.mxu0
        %v565 = vsel %vm540, %v537, 0
        %567 = vmatpush.msra.mxu0 0.0
        %568 = vmatpush.msra.mxu0 0.0
        %569 = vmatpush.msra.mxu0 0.0
        %570 = vmatpush.msra.mxu0 0.0
        %571 = vmatpush.msra.mxu0 0.0
        %572 = vmatpush.msra.mxu0 0.0
        %573 = vmatpush.msra.mxu0 0.0
        %574 = vmatpush.msra.mxu0 0.0
        %575 = vmatpush.msra.mxu0 0.0
        %576 = vmatpush.msra.mxu0 0.0
        %577 = vmatpush.msra.mxu0 0.0
        %578 = vmatpush.msra.mxu0 0.0
        %579 = vmatpush.msra.mxu0 0.0
        %580 = vmatpush.msra.mxu0 0.0
        %581 = vmatpush.msra.mxu0 0.0
        %582 = vmatpush.msra.mxu0 %v527
        %583 = vmatmul.f32.gmra.mxu0 %v565
        %v584 = vpop.f32.mrf.mxu0
        %v585 = vadd.f32 %v562, %v584
        %586 = vdwg.mxu0
        %s587 = scalar_lea.vmem [#allocation8], 16
        %v588 = vld [vmem:[%s587] sm:$0xff]
        %v590 = vsel %vm540, %v588, 0
        %592 = vmatpush.msra.mxu0 0.0
        %593 = vmatpush.msra.mxu0 0.0
        %594 = vmatpush.msra.mxu0 0.0
        %595 = vmatpush.msra.mxu0 0.0
        %596 = vmatpush.msra.mxu0 0.0
        %597 = vmatpush.msra.mxu0 0.0
        %598 = vmatpush.msra.mxu0 0.0
        %599 = vmatpush.msra.mxu0 0.0
        %600 = vmatpush.msra.mxu0 0.0
        %601 = vmatpush.msra.mxu0 0.0
        %602 = vmatpush.msra.mxu0 0.0
        %603 = vmatpush.msra.mxu0 0.0
        %604 = vmatpush.msra.mxu0 0.0
        %605 = vmatpush.msra.mxu0 0.0
        %606 = vmatpush.msra.mxu0 0.0
        %607 = vmatpush.msra.mxu0 %v536
        %608 = vmatmul.f32.gmra.mxu0 %v590
        %v609 = vpop.f32.mrf.mxu0
        %v610 = vadd.f32 0.0, %v609
        %611 = vdwg.mxu0
        %v612 = vadd.f32 %v585, %v610
        %v613 = vld [vmem:[%s5] sm:$0xff]
        %615 = vset.pattern.permute.xlu0 0
        %616 = vperm.xlu0 %615, %v613
        %v617 = vpop.permute.xlu0 %616
        %v619 = vadd.f32 %v612, %v617
        %v620 = vmax.f32 %v619, 0.0
        %v621 = vld [vmem:[#allocation10] sm:$0xff]
        %v622 = vld [vmem:[%s7] sm:$0xff]
        %624 = vset.pattern.permute.xlu0 0
        %625 = vperm.xlu0 %624, %v622
        %v626 = vpop.permute.xlu0 %625
        %v629 = vsel %vm540, %v621, 0
        %631 = vmatpush.msra.mxu0 0.0
        %632 = vmatpush.msra.mxu0 0.0
        %633 = vmatpush.msra.mxu0 0.0
        %634 = vmatpush.msra.mxu0 0.0
        %635 = vmatpush.msra.mxu0 0.0
        %636 = vmatpush.msra.mxu0 0.0
        %637 = vmatpush.msra.mxu0 0.0
        %638 = vmatpush.msra.mxu0 0.0
        %639 = vmatpush.msra.mxu0 0.0
        %640 = vmatpush.msra.mxu0 0.0
        %641 = vmatpush.msra.mxu0 0.0
        %642 = vmatpush.msra.mxu0 0.0
        %643 = vmatpush.msra.mxu0 0.0
        %644 = vmatpush.msra.mxu0 0.0
        %645 = vmatpush.msra.mxu0 0.0
        %646 = vmatpush.msra.mxu0 %v620
        %647 = vmatmul.f32.gmra.mxu0 %v629
        %v648 = vpop.f32.mrf.mxu0
        %v649 = vadd.f32 %v626, %v648
        %650 = vdwg.mxu0
        %v651 = vadd.f32 %v509, %v649
        %v652 = vld [vmem:[%s430] sm:$0x1]
        %v654 = vperm.slane %v652, 0
        %v656 = vmul.f32 %v651, %v654
        %657 = vst [vmem:[%s492] sm:$0xff] %v656
        %s658 = sand.u32 %s259, 1
        %s659 = scalar_lea.sflag [#allocation4], %s658
        %s660 = sand.u32 %s259, 1
        %s661 = smul.addr %s660, 8
        %s662 = scalar_lea.vmem [#allocation11], %s661
        // Predicated region
        $region73: #{tpu_custom_call.1} parent=51 // pred_check
          %p663 = pneg %p269
        $region74: #{tpu_custom_call.1} parent=51 // pred_check_branch
          %665 = sbr.rel (%p663) target = $region76
        $region75: #{tpu_custom_call.1} parent=51 // pred_region
          %667 = vsyncadd %s659, 0
          %s668 = sadd.s32 %s34, %s33
          %s669 = smul.addr %s668, 8
          %s670 = scalar_lea.hbm %s8, %s669
          %s672 = sshll.u32 %s662, 4
          %s673 = int_to_ptr.vmem [resolvable:$true] %s672
          %s674 = sshll.u32 %s670, 4
          %s675 = int_to_ptr.hbm [resolvable:$true] %s674
          %677 = dma.vmem_to_hbm [thread:$0]  %s673, 128, %s675, %s659
        $region76: #{tpu_custom_call.1} parent=51 // pred_fallthru
          _
      $region52: #{tpu_custom_call.1} parent=5 // pred_fallthru
        _
      %p678 = scmp.le.s32.totalorder 2, %s24
      // Predicated region
      $region77: #{tpu_custom_call.1} parent=5 // pred_check
        %p679 = pneg %p678
      $region78: #{tpu_custom_call.1} parent=5 // pred_check_branch
        %681 = sbr.rel (%p679) target = $region80
      $region79: #{tpu_custom_call.1} parent=5 // pred_region
        %s682 = ssub.s32 %s24, 2
        // Predicated region
        $region81: #{tpu_custom_call.1} parent=79 // pred_check
          %p683 = pneg %p275
        $region82: #{tpu_custom_call.1} parent=79 // pred_check_branch
          %685 = sbr.rel (%p683) target = $region84
        $region83: #{tpu_custom_call.1} parent=79 // pred_region
          %s686 = sand.u32 %s260, 1
          %s687 = scalar_lea.sflag [#allocation4], %s686
          %s688 = sand.u32 %s260, 1
          %s689 = smul.addr %s688, 8
          %s690 = scalar_lea.vmem [#allocation11], %s689
          %692 = dma.done %s687, 128
        $region84: #{tpu_custom_call.1} parent=79 // pred_fallthru
          _
      $region80: #{tpu_custom_call.1} parent=5 // pred_fallthru
        _
    $region6: #{tpu_custom_call.1} parent=1 // loop_footer
      %s28 = sadd.s32 1, %s24
    $region7: #{tpu_custom_call.1} parent=1 // loop_footer_branch
      %23 = sbr.rel target = $region3
    $region8: #{tpu_custom_call.1} parent=1 // loop_exit
      _
    %693 = vsyncpa [#allocation3], 1
    %s694 = scalar_lea.sflag [#allocation3], 1
    %695 = vsyncpa %s694, 1
    %696 = vsyncpa [#allocation6], 1
    %s697 = scalar_lea.sflag [#allocation6], 1
    %698 = vsyncpa %s697, 1
    %699 = vsyncpa [#allocation9], 1
    %700 = vsyncpa [#allocation4], 1
    %s701 = scalar_lea.sflag [#allocation4], 1
    %702 = vsyncpa %s701, 1

</llo_original>
